<compile_context>
chip_gen: v5e
topology: v5e:2x2
jax: 0.10.0
libtpu: 0.0.40
codegen_flags: <defaults>
</compile_context>

<pallas_src>
import functools

import jax
import jax.numpy as jnp
from jax import lax
from jax.experimental import pallas as pl
from jax.experimental.pallas import tpu as pltpu


# ----------------------------------------------------------------------------
# Tiled linear (matmul + bias) kernel — used for the qkv and proj projections.
# ----------------------------------------------------------------------------
def _linear_kernel(x_ref, w_ref, b_ref, o_ref, acc_ref):
    @pl.when(pl.program_id(2) == 0)
    def _init():
        acc_ref[...] = jnp.zeros_like(acc_ref)

    acc_ref[...] += jnp.dot(x_ref[...], w_ref[...],
                            preferred_element_type=jnp.float32)

    @pl.when(pl.program_id(2) == pl.num_programs(2) - 1)
    def _finalize():
        o_ref[...] = (acc_ref[...] + b_ref[...].astype(jnp.float32)).astype(o_ref.dtype)


def _pick_k_tile(K, cap=512):
    """Contraction tile must divide K exactly (padded-K garbage would corrupt acc)."""
    if K <= cap:
        return K
    for t in range(cap, 127, -128):
        if K % t == 0:
            return t
    # TODO(synk): pad K on the host for contraction sizes with no nice divisor.
    return K


def linear(x2d, w, b, *, tm_cap=256, tn_cap=256, tk_cap=512):
    """x2d: (M, K), w: (K, Nout), b: (Nout,) -> (M, Nout)."""
    M, K = x2d.shape
    Nout = w.shape[1]
    tm = M if M <= tm_cap else tm_cap
    tn = Nout if Nout <= tn_cap else tn_cap
    tk = _pick_k_tile(K, tk_cap)

    return pl.pallas_call(
        _linear_kernel,
        out_shape=jax.ShapeDtypeStruct((M, Nout), x2d.dtype),
        grid=(pl.cdiv(M, tm), pl.cdiv(Nout, tn), pl.cdiv(K, tk)),
        in_specs=[
            pl.BlockSpec((tm, tk), lambda i, j, k: (i, k)),
            pl.BlockSpec((tk, tn), lambda i, j, k: (k, j)),
            pl.BlockSpec((1, tn), lambda i, j, k: (0, j)),
        ],
        out_specs=pl.BlockSpec((tm, tn), lambda i, j, k: (i, j)),
        scratch_shapes=[pltpu.VMEM((tm, tn), jnp.float32)],
        compiler_params=pltpu.CompilerParams(
            dimension_semantics=("parallel", "parallel", "arbitrary")),
    )(x2d, w, b.reshape(1, Nout))


# ----------------------------------------------------------------------------
# Per-head attention math (shared by both attention kernels).
#   p = softmax(q*scale @ k^T)  [blended with the previous global map if asked]
#   o = p @ v
# ----------------------------------------------------------------------------
def _one_head(q, k, v, g, rv, scale, blend):
    # scale folded into q: N*hd multiplies instead of N^2.
    s = lax.dot_general(q * scale, k, (((1,), (1,)), ((), ())),
                        preferred_element_type=jnp.float32)
    s = s - jnp.max(s, axis=-1, keepdims=True)
    e = jnp.exp(s)
    p = e * pl.reciprocal(jnp.sum(e, axis=-1, keepdims=True), approx=True)
    if blend:
        p = rv * p + (1.0 - rv) * g.astype(jnp.float32)
    o = jnp.dot(p.astype(v.dtype), v, preferred_element_type=jnp.float32)
    return p, o


# ----------------------------------------------------------------------------
# Grouped kernel: grid=(B, H/hpg); one head group per step.  q/k/v column
# blocks are picked by the BlockSpec index_map (lane-aligned, no dynamic
# lane offsets in-kernel); the context store is one group-wide slab.
# ----------------------------------------------------------------------------
def _attn_group_kernel(q_ref, k_ref, v_ref, *rest, hpg, head_dim, scale, blend):
    if blend:
        g_ref, r_ref, attn_ref, ctx_ref = rest
        rv = r_ref[0]
    else:
        attn_ref, ctx_ref = rest
        rv = None

    outs = []
    for hl in range(hpg):                       # short, unrolled local-head loop
        lo = hl * head_dim
        q = q_ref[:, lo:lo + head_dim]          # native dtype slices
        k = k_ref[:, lo:lo + head_dim]
        v = v_ref[:, lo:lo + head_dim]
        g = g_ref[hl] if blend else None
        p, o = _one_head(q, k, v, g, rv, scale, blend)
        attn_ref[hl] = p.astype(attn_ref.dtype)
        outs.append(o)

    ctx = outs[0] if len(outs) == 1 else jnp.concatenate(outs, axis=-1)
    ctx_ref[...] = ctx.astype(ctx_ref.dtype)    # lane-dense group-wide store


# ----------------------------------------------------------------------------
# Fallback kernel (lane-unaligned head groups): grid=(B,), all heads per step.
# ----------------------------------------------------------------------------
def _attn_full_kernel(qkv_ref, *rest, num_heads, head_dim, scale, blend):
    if blend:
        g_ref, r_ref, attn_ref, ctx_ref = rest
        rv = r_ref[0]
    else:
        attn_ref, ctx_ref = rest
        rv = None

    C = num_heads * head_dim
    outs = []
    for h in range(num_heads):
        lo = h * head_dim
        q = qkv_ref[:, lo:lo + head_dim]                    # native dtype slices
        k = qkv_ref[:, C + lo:C + lo + head_dim]
        v = qkv_ref[:, 2 * C + lo:2 * C + lo + head_dim]
        g = g_ref[h] if blend else None
        p, o = _one_head(q, k, v, g, rv, scale, blend)
        attn_ref[h] = p.astype(attn_ref.dtype)
        outs.append(o)

    ctx = outs[0] if len(outs) == 1 else jnp.concatenate(outs, axis=-1)
    ctx_ref[...] = ctx.astype(ctx_ref.dtype)


def _pick_heads_per_group(num_heads, head_dim, lane=128):
    """Smallest divisor of num_heads whose group width is lane aligned."""
    for d in range(1, num_heads + 1):
        if num_heads % d == 0 and (d * head_dim) % lane == 0:
            return d
    return num_heads


# ----------------------------------------------------------------------------
# Attention core: qkv (B, N, 3C) [+ optional global map (B, H, N, N)]
#   -> attn (B, H, N, N) f32, ctx (B, N, C)
# ----------------------------------------------------------------------------
def attention_core(qkv, g_last, r, num_heads, scale):
    B, N, C3 = qkv.shape
    C = C3 // 3
    hd = C // num_heads
    blend = g_last is not None

    hpg = _pick_heads_per_group(num_heads, hd)
    gw = hpg * hd
    # Grouped column BlockSpecs need the group width to be a lane multiple.
    grouped = (gw % 128 == 0)

    r_arr = jnp.asarray(r, dtype=jnp.float32).reshape((1,))
    r_spec = pl.BlockSpec(memory_space=pltpu.MemorySpace.SMEM)

    if grouped:
        G = num_heads // hpg
        q_spec = pl.BlockSpec((None, N, gw), lambda b, g: (b, 0, g))
        k_spec = pl.BlockSpec((None, N, gw), lambda b, g: (b, 0, G + g))
        v_spec = pl.BlockSpec((None, N, gw), lambda b, g: (b, 0, 2 * G + g))
        map_spec = pl.BlockSpec((None, hpg, N, N), lambda b, g: (b, g, 0, 0))
        ctx_spec = pl.BlockSpec((None, N, gw), lambda b, g: (b, 0, g))
        kernel = functools.partial(_attn_group_kernel, hpg=hpg, head_dim=hd,
                                   scale=scale, blend=blend)
        in_specs = [q_spec, k_spec, v_spec] + ([map_spec, r_spec] if blend else [])
        args = (qkv, qkv, qkv) + ((g_last, r_arr) if blend else ())
        grid = (B, G)
        sem = ("parallel", "parallel")
    else:
        qkv_spec = pl.BlockSpec((None, N, C3), lambda b: (b, 0, 0))
        map_spec = pl.BlockSpec((None, num_heads, N, N), lambda b: (b, 0, 0, 0))
        ctx_spec = pl.BlockSpec((None, N, C), lambda b: (b, 0, 0))
        kernel = functools.partial(_attn_full_kernel, num_heads=num_heads,
                                   head_dim=hd, scale=scale, blend=blend)
        in_specs = [qkv_spec] + ([map_spec, r_spec] if blend else [])
        args = (qkv,) + ((g_last, r_arr) if blend else ())
        grid = (B,)
        sem = ("parallel",)

    attn, ctx = pl.pallas_call(
        kernel,
        out_shape=(
            jax.ShapeDtypeStruct((B, num_heads, N, N), jnp.float32),
            jax.ShapeDtypeStruct((B, N, C), qkv.dtype),
        ),
        grid=grid,
        in_specs=in_specs,
        out_specs=(map_spec, ctx_spec),
        compiler_params=pltpu.CompilerParams(dimension_semantics=sem),
    )(*args)
    return attn, ctx


# ----------------------------------------------------------------------------
# Module-level wrapper — only free reshapes around the two pallas_calls.
# ----------------------------------------------------------------------------
def attention_forward(x, r, params, num_heads, global_attn=None):
    """x: (B, N, C), r: tradeoff scalar, global_attn: (L, B, H, N, N) or None."""
    B, N, C = x.shape
    head_dim = C // num_heads
    scale = head_dim ** (-0.5)

    qkv = linear(x.reshape(B * N, C), params["w_qkv"], params["b_qkv"])     # (B*N, 3C)
    qkv = qkv.reshape(B, N, 3 * C)                                          # free reshape

    g_last = None if global_attn is None else global_attn[-1]               # (B, H, N, N)
    attn, ctx = attention_core(qkv, g_last, r, num_heads, scale)            # ctx: (B, N, C)

    out = linear(ctx.reshape(B * N, C), params["w_proj"], params["b_proj"])
    return out.reshape(B, N, C), attn


# ----------------------------------------------------------------------------
# Pure-JAX reference (silent correctness check).
# ----------------------------------------------------------------------------
def attention_ref(x, r, params, num_heads, global_attn=None):
    B, N, C = x.shape
    hd = C // num_heads
    scale = hd ** (-0.5)
    qkv = x @ params["w_qkv"] + params["b_qkv"]
    qkv = qkv.reshape(B, N, 3, num_heads, hd).transpose(2, 0, 3, 1, 4)
    q, k, v = qkv[0], qkv[1], qkv[2]
    attn = jnp.einsum("bhnd,bhmd->bhnm", q, k) * scale
    attn = jax.nn.softmax(attn, axis=-1)
    if global_attn is not None:
        attn = r * attn + (1.0 - r) * global_attn[-1]
    out = jnp.einsum("bhnm,bhmd->bhnd", attn, v)
    out = out.transpose(0, 2, 1, 3).reshape(B, N, C)
    out = out @ params["w_proj"] + params["b_proj"]
    return out, attn


if __name__ == "__main__":
    key = jax.random.PRNGKey(0)

    def make_case(case_key, B, N, C, H, n_layers=2):
        k_x, k_wqkv, k_wproj, k_bproj, k_g = jax.random.split(case_key, 5)
        x = jax.random.normal(k_x, (B, N, C), dtype=jnp.float32)
        # qkv_bias=False -> zero qkv bias; proj has bias.
        params = {
            "w_qkv": jax.random.normal(k_wqkv, (C, 3 * C), dtype=jnp.float32) * 0.05,
            "b_qkv": jnp.zeros((3 * C,), dtype=jnp.float32),
            "w_proj": jax.random.normal(k_wproj, (C, C), dtype=jnp.float32) * 0.05,
            "b_proj": jax.random.normal(k_bproj, (C,), dtype=jnp.float32) * 0.01,
        }
        global_attn = jax.nn.softmax(
            jax.random.normal(k_g, (n_layers, B, H, N, N), dtype=jnp.float32), axis=-1)
        return x, params, global_attn

    r = 0.7
    cases = [
        (2, 8, 32, 8),      # dim=32, heads=8 (head_dim=4): fallback per-batch kernel
        (2, 16, 256, 4),    # head_dim=64: grouped kernel (grid over head pairs)
    ]
    case_keys = jax.random.split(key, len(cases))

    # approx=True reciprocal (EUP) -> slightly looser tolerances than exact f32.
    ATOL = RTOL = 3e-3

    for ck, (B, N, C, H) in zip(case_keys, cases):
        x, params, global_attn = make_case(ck, B, N, C, H)

        # Path with the global-attention blend.
        out, attn = attention_forward(x, r, params, H, global_attn)
        out = jax.block_until_ready(out)
        attn = jax.block_until_ready(attn)
        out_r, attn_r = attention_ref(x, r, params, H, global_attn)
        assert out.shape == (B, N, C) and attn.shape == (B, H, N, N)
        assert jnp.allclose(out, out_r, atol=ATOL, rtol=RTOL), (B, N, C, H, "out-blend")
        assert jnp.allclose(attn, attn_r, atol=ATOL, rtol=RTOL), (B, N, C, H, "attn-blend")

        # Specialized global_attn=None path.
        out2, attn2 = attention_forward(x, r, params, H, None)
        out2 = jax.block_until_ready(out2)
        out2_r, attn2_r = attention_ref(x, r, params, H, None)
        assert jnp.allclose(out2, out2_r, atol=ATOL, rtol=RTOL), (B, N, C, H, "out")
        assert jnp.allclose(attn2, attn2_r, atol=ATOL, rtol=RTOL), (B, N, C, H, "attn")

    print("KERNEL_OK")
</pallas_src>

<mosaic_0001>
module attributes {stable_mosaic.version = 11 : i64} {
  func.func @_linear_kernel(%arg0: i32, %arg1: i32, %arg2: i32, %arg3: memref<16x32xf32, #tpu.memory_space<vmem>>, %arg4: memref<32x96xf32, #tpu.memory_space<vmem>>, %arg5: memref<1x96xf32, #tpu.memory_space<vmem>>, %arg6: memref<16x96xf32, #tpu.memory_space<vmem>>, %arg7: memref<16x96xf32, #tpu.memory_space<vmem>>) attributes {dimension_semantics = [#tpu.dimension_semantics<parallel>, #tpu.dimension_semantics<parallel>, #tpu.dimension_semantics<arbitrary>], iteration_bounds = array<i64: 1, 1, 1>, scalar_prefetch = 0 : i64, scratch_operands = 1 : i64, tpu.core_type = #tpu.core_type<tc>, window_params = [{transform_indices = @transform_0, window_bounds = array<i64: 16, 32>}, {transform_indices = @transform_1, window_bounds = array<i64: 32, 96>}, {transform_indices = @transform_2, window_bounds = array<i64: 1, 96>}, {transform_indices = @transform_3, window_bounds = array<i64: 16, 96>}]} {
    %c0_i32 = arith.constant 0 : i32
    %0 = arith.cmpi eq, %arg2, %c0_i32 : i32
    %1 = arith.extui %0 : i1 to i32
    %c0_i32_0 = arith.constant 0 : i32
    %2 = arith.cmpi ne, %1, %c0_i32_0 : i32
    scf.if %2 {
      %cst_10 = arith.constant 0.000000e+00 : f32
      %12 = vector.broadcast %cst_10 : f32 to vector<16x96xf32>
      %c0_11 = arith.constant 0 : index
      %c0_12 = arith.constant 0 : index
      %13 = vector.load %arg7[%c0_11, %c0_12] : memref<16x96xf32, #tpu.memory_space<vmem>>, vector<16x96xf32>
      tpu.vector_store %arg7[%c0_11, %c0_12], %12 {strides = array<i32>} : memref<16x96xf32, #tpu.memory_space<vmem>>, vector<16x96xf32>,
    } else {
    }
    %c0 = arith.constant 0 : index
    %c0_1 = arith.constant 0 : index
    %3 = vector.load %arg7[%c0, %c0_1] : memref<16x96xf32, #tpu.memory_space<vmem>>, vector<16x96xf32>
    %c0_2 = arith.constant 0 : index
    %c0_3 = arith.constant 0 : index
    %4 = vector.load %arg3[%c0_2, %c0_3] : memref<16x32xf32, #tpu.memory_space<vmem>>, vector<16x32xf32>
    %c0_4 = arith.constant 0 : index
    %c0_5 = arith.constant 0 : index
    %5 = vector.load %arg4[%c0_4, %c0_5] : memref<32x96xf32, #tpu.memory_space<vmem>>, vector<32x96xf32>
    %cst = arith.constant dense<0.000000e+00> : vector<16x96xf32>
    %6 = tpu.matmul %4, %5, %cst {dimension_numbers = #tpu.dot_dimension_numbers<[1], [0], [0], [1], [0, 0, 1, 1], [], []>} : vector<16x32xf32>, vector<32x96xf32>, vector<16x96xf32> -> vector<16x96xf32>
    %7 = arith.addf %3, %6 : vector<16x96xf32>
    %c0_6 = arith.constant 0 : index
    %c0_7 = arith.constant 0 : index
    %8 = vector.load %arg7[%c0_6, %c0_7] : memref<16x96xf32, #tpu.memory_space<vmem>>, vector<16x96xf32>
    tpu.vector_store %arg7[%c0_6, %c0_7], %7 {strides = array<i32>} : memref<16x96xf32, #tpu.memory_space<vmem>>, vector<16x96xf32>,
    %c0_i32_8 = arith.constant 0 : i32
    %9 = arith.cmpi eq, %arg2, %c0_i32_8 : i32
    %10 = arith.extui %9 : i1 to i32
    %c0_i32_9 = arith.constant 0 : i32
    %11 = arith.cmpi ne, %10, %c0_i32_9 : i32
    scf.if %11 {
      %c0_10 = arith.constant 0 : index
      %c0_11 = arith.constant 0 : index
      %12 = vector.load %arg7[%c0_10, %c0_11] : memref<16x96xf32, #tpu.memory_space<vmem>>, vector<16x96xf32>
      %c0_12 = arith.constant 0 : index
      %c0_13 = arith.constant 0 : index
      %13 = vector.load %arg5[%c0_12, %c0_13] : memref<1x96xf32, #tpu.memory_space<vmem>>, vector<1x96xf32>
      %14 = vector.broadcast %13 : vector<1x96xf32> to vector<16x96xf32>
      %15 = arith.addf %12, %14 : vector<16x96xf32>
      %c0_14 = arith.constant 0 : index
      %c0_15 = arith.constant 0 : index
      %16 = vector.load %arg6[%c0_14, %c0_15] : memref<16x96xf32, #tpu.memory_space<vmem>>, vector<16x96xf32>
      tpu.vector_store %arg6[%c0_14, %c0_15], %15 {strides = array<i32>} : memref<16x96xf32, #tpu.memory_space<vmem>>, vector<16x96xf32>,
    } else {
    }
    return
  }
  func.func @transform_0(%arg0: i32, %arg1: i32, %arg2: i32) -> (i32, i32) {
    %c0_i32 = arith.constant 0 : i32
    return %arg0, %arg2 : i32, i32
  }
  func.func @transform_1(%arg0: i32, %arg1: i32, %arg2: i32) -> (i32, i32) {
    %c0_i32 = arith.constant 0 : i32
    return %arg2, %arg1 : i32, i32
  }
  func.func @transform_2(%arg0: i32, %arg1: i32, %arg2: i32) -> (i32, i32) {
    %c0_i32 = arith.constant 0 : i32
    %c0_i32_0 = arith.constant 0 : i32
    return %c0_i32, %arg1 : i32, i32
  }
  func.func @transform_3(%arg0: i32, %arg1: i32, %arg2: i32) -> (i32, i32) {
    %c0_i32 = arith.constant 0 : i32
    return %arg0, %arg1 : i32, i32
  }
}

</mosaic_0001>

<llo_original>
// kernel: tpu_custom_call.1
$region0: #{tpu_custom_call.1}
  #allocation0 [shape = 'u32[]', space=smem, size = 0x4, offset = 0x4, fixed_abs, tag = 'smem constant byte address 0x4 - core index']
  #allocation1 [shape = 'u32[72,128]{1,0:T(1,128)}', space=vmem, size = 0x9000, scoped, tag = 'internal scratch']
  #allocation2 [shape = 'f32[16,96]{1,0:T(8,128)}', space=vmem, size = 0x2000, scoped, tag = 'scratch operand']
  %s0 = inlined_call_operand.hbm [shape: f32[16,32], index: 0, kind: input, shape index: {}]
  %s1 = inlined_call_operand.hbm [shape: f32[32,96], index: 1, kind: input, shape index: {}]
  %s2 = inlined_call_operand.vmem [shape: f32[1,96], index: 2, kind: input, shape index: {}]
  %s3 = inlined_call_operand.hbm [shape: f32[16,96], index: 3, kind: output, shape index: {}]
  %s4 = sld [smem:[#allocation0]]
  $region38: #{tpu_custom_call.1} parent=0
    _
  %s6 = ssub.s32 1, %s4
  %s7 = scalar_select 0, %s6, %s4
  $region1: #{tpu_custom_call.1} parent=0
    #allocation3 [shape = 'u8[8192]{0}', space=vmem, size = 0x2000, scoped, tag = 'input window, operand 0, single buffered']
    #allocation4 [shape = 's32[1]{0}', space=sflag, size = 0x4, scoped, tag = 'scoped memory for tpu_custom_call.1']
    #allocation5 [shape = 's32[1]{0}', space=sflag, size = 0x4, scoped, tag = 'scoped memory for tpu_custom_call.1']
    #allocation6 [shape = 'u8[16384]{0}', space=vmem, size = 0x4000, scoped, tag = 'input window, operand 1, single buffered']
    #allocation7 [shape = 's32[1]{0}', space=sflag, size = 0x4, scoped, tag = 'scoped memory for tpu_custom_call.1']
    #allocation8 [shape = 'u8[8192]{0}', space=vmem, size = 0x2000, scoped, tag = 'output window, operand 0, single buffered']
    %8 = vsyncpa [#allocation4], 0
    %9 = vsyncpa [#allocation7], 0
    %10 = vsyncpa [#allocation5], 0
    // Predicated region
    $region2: #{tpu_custom_call.1} parent=1 // pred_check
      _
    $region3: #{tpu_custom_call.1} parent=1 // pred_check_branch
      %12 = sbr.rel (0) target = $region5
    $region4: #{tpu_custom_call.1} parent=1 // pred_region
      %14 = vsyncadd [#allocation4], 0
      %s15 = sshll.u32 %s0, 4
      %s16 = int_to_ptr.hbm [resolvable:$true] %s15
      %s17 = sshll.u32 [#allocation3], 4
      %s18 = int_to_ptr.vmem [resolvable:$true] %s17
      %23 = dma.hbm_to_vmem [thread:$0]  %s16, 256, %s18, [#allocation4], 128, 128, 8
    $region5: #{tpu_custom_call.1} parent=1 // pred_fallthru
      _
    // Predicated region
    $region6: #{tpu_custom_call.1} parent=1 // pred_check
      _
    $region7: #{tpu_custom_call.1} parent=1 // pred_check_branch
      %25 = sbr.rel (0) target = $region9
    $region8: #{tpu_custom_call.1} parent=1 // pred_region
      %27 = vsyncadd [#allocation7], 0
      %s28 = sshll.u32 %s1, 4
      %s29 = int_to_ptr.hbm [resolvable:$true] %s28
      %s30 = sshll.u32 [#allocation6], 4
      %s31 = int_to_ptr.vmem [resolvable:$true] %s30
      %36 = dma.hbm_to_vmem [thread:$0]  %s29, 512, %s31, [#allocation7], 128, 128, 8
    $region9: #{tpu_custom_call.1} parent=1 // pred_fallthru
      _
    // Predicated region
    $region10: #{tpu_custom_call.1} parent=1 // pred_check
      _
    $region11: #{tpu_custom_call.1} parent=1 // pred_check_branch
      %38 = sbr.rel (0) target = $region13
    $region12: #{tpu_custom_call.1} parent=1 // pred_region
      _
    $region13: #{tpu_custom_call.1} parent=1 // pred_fallthru
      _
    // Predicated region
    $region14: #{tpu_custom_call.1} parent=1 // pred_check
      _
    $region15: #{tpu_custom_call.1} parent=1 // pred_check_branch
      %40 = sbr.rel (0) target = $region17
    $region16: #{tpu_custom_call.1} parent=1 // pred_region
      %42 = dma.done [#allocation4], 256
    $region17: #{tpu_custom_call.1} parent=1 // pred_fallthru
      _
    // Predicated region
    $region18: #{tpu_custom_call.1} parent=1 // pred_check
      _
    $region19: #{tpu_custom_call.1} parent=1 // pred_check_branch
      %44 = sbr.rel (0) target = $region21
    $region20: #{tpu_custom_call.1} parent=1 // pred_region
      %46 = dma.done [#allocation7], 512
    $region21: #{tpu_custom_call.1} parent=1 // pred_fallthru
      _
    %p47 = scmp.eq.s32.totalorder 0, 0
    // Predicated region
    $region22: #{tpu_custom_call.1} parent=1 // pred_check
      %p48 = pneg %p47
    $region23: #{tpu_custom_call.1} parent=1 // pred_check_branch
      %50 = sbr.rel (%p48) target = $region25
    $region24: #{tpu_custom_call.1} parent=1 // pred_region
      %vm51 = vcmask 785408
      %52 = vst.msk [vmem:[#allocation2] sm:$0xff] %vm51, 0.0
      %53 = vst.msk [vmem:[#allocation2 + $0x8] sm:$0xff] %vm51, 0.0
    $region25: #{tpu_custom_call.1} parent=1 // pred_fallthru
      _
    %v54 = vld [vmem:[#allocation2] sm:$0xff]
    %v55 = vld [vmem:[#allocation2 + $0x8] sm:$0xff]
    %v56 = vld [vmem:[#allocation3] sm:$0xff]
    %v57 = vld [vmem:[#allocation3 + $0x8] sm:$0xff]
    %v58 = vld [vmem:[#allocation6] sm:$0xff]
    %v59 = vld [vmem:[#allocation6 + $0x8] sm:$0xff]
    %v60 = vld [vmem:[#allocation6 + $0x10] sm:$0xff]
    %v61 = vld [vmem:[#allocation6 + $0x18] sm:$0xff]
    %vm62 = vcmask 261120
    %v64 = vsel %vm62, %v56, 0
    %v67 = vsel %vm62, %v57, 0
    %69 = vmatpush.msra.mxu0 0.0
    %70 = vmatpush.msra.mxu0 0.0
    %71 = vmatpush.msra.mxu0 0.0
    %72 = vmatpush.msra.mxu0 0.0
    %73 = vmatpush.msra.mxu0 0.0
    %74 = vmatpush.msra.mxu0 0.0
    %75 = vmatpush.msra.mxu0 0.0
    %76 = vmatpush.msra.mxu0 0.0
    %77 = vmatpush.msra.mxu0 0.0
    %78 = vmatpush.msra.mxu0 0.0
    %79 = vmatpush.msra.mxu0 0.0
    %80 = vmatpush.msra.mxu0 0.0
    %81 = vmatpush.msra.mxu0 %v61
    %82 = vmatpush.msra.mxu0 %v60
    %83 = vmatpush.msra.mxu0 %v59
    %84 = vmatpush.msra.mxu0 %v58
    %85 = vmatmul.f32.gmra.mxu0 %v64
    %v86 = vpop.f32.mrf.mxu0
    %v87 = vadd.f32 0.0, %v86
    %88 = vmatmul.f32.gmra.mxu0 %v67
    %v89 = vpop.f32.mrf.mxu0
    %v90 = vadd.f32 0.0, %v89
    %91 = vdwg.mxu0
    %v92 = vadd.f32 %v54, %v87
    %v93 = vadd.f32 %v55, %v90
    %vm94 = vcmask 785408
    %95 = vst.msk [vmem:[#allocation2] sm:$0xff] %vm94, %v92
    %96 = vst.msk [vmem:[#allocation2 + $0x8] sm:$0xff] %vm94, %v93
    // Predicated region
    $region26: #{tpu_custom_call.1} parent=1 // pred_check
      %p97 = pneg %p47
    $region27: #{tpu_custom_call.1} parent=1 // pred_check_branch
      %99 = sbr.rel (%p97) target = $region29
    $region28: #{tpu_custom_call.1} parent=1 // pred_region
      %v100 = vld [vmem:[#allocation2] sm:$0xff]
      %v101 = vld [vmem:[#allocation2 + $0x8] sm:$0xff]
      %v102 = vld [vmem:[%s2] sm:$0x1]
      %v104 = vperm.slane %v102, 0
      %v106 = vadd.f32 %v100, %v104
      %v107 = vadd.f32 %v101, %v104
      %108 = vst.msk [vmem:[#allocation8] sm:$0xff] %vm94, %v106
      %109 = vst.msk [vmem:[#allocation8 + $0x8] sm:$0xff] %vm94, %v107
    $region29: #{tpu_custom_call.1} parent=1 // pred_fallthru
      _
    // Predicated region
    $region30: #{tpu_custom_call.1} parent=1 // pred_check
      _
    $region31: #{tpu_custom_call.1} parent=1 // pred_check_branch
      %111 = sbr.rel (0) target = $region33
    $region32: #{tpu_custom_call.1} parent=1 // pred_region
      %113 = vsyncadd [#allocation5], 0
      %s114 = sshll.u32 [#allocation8], 4
      %s115 = int_to_ptr.vmem [resolvable:$true] %s114
      %s116 = sshll.u32 %s3, 4
      %s117 = int_to_ptr.hbm [resolvable:$true] %s116
      %122 = dma.vmem_to_hbm [thread:$0]  %s115, 256, %s117, [#allocation5], 128, 128, 8
    $region33: #{tpu_custom_call.1} parent=1 // pred_fallthru
      _
    // Predicated region
    $region34: #{tpu_custom_call.1} parent=1 // pred_check
      _
    $region35: #{tpu_custom_call.1} parent=1 // pred_check_branch
      %124 = sbr.rel (0) target = $region37
    $region36: #{tpu_custom_call.1} parent=1 // pred_region
      %126 = dma.done [#allocation5], 256
    $region37: #{tpu_custom_call.1} parent=1 // pred_fallthru
      _
    %127 = vsyncpa [#allocation4], 1
    %128 = vsyncpa [#allocation7], 1
    %129 = vsyncpa [#allocation5], 1

</llo_original>
